<compile_context>
chip_gen: v6e
topology: v6e:2x2x1
jax: 0.10.0
libtpu: 0.0.40
codegen_flags: <defaults>
</compile_context>

<pallas_src>
import jax
import jax.numpy as jnp
from jax.experimental import pallas as pl
from jax.experimental.pallas import tpu as pltpu


def linear_kernel(x_ref, w_ref, b_ref, o_ref):
    # x_ref: (M, Fin) VMEM   w_ref: (Fin, Fout) VMEM   b_ref: (1, Fout) VMEM
    # o_ref: (M, Fout) VMEM
    y = jnp.dot(x_ref[...], w_ref[...], preferred_element_type=jnp.float32)
    o_ref[...] = (y + b_ref[...]).astype(o_ref.dtype)


def pallas_linear(x, weight, bias):
    """y = x @ weight.T + bias applied over the last dim of x."""
    orig_shape = x.shape
    fin = orig_shape[-1]
    fout = weight.shape[0]
    x2d = x.reshape(-1, fin)
    m = x2d.shape[0]
    w_t = weight.T                 # (Fin, Fout): pre-transposed on host (fused, free)
    b2d = bias.reshape(1, fout)    # broadcast row

    bytes_accessed = 4 * (x2d.size + w_t.size + b2d.size + m * fout)
    out2d = pl.pallas_call(
        linear_kernel,
        out_shape=jax.ShapeDtypeStruct((m, fout), x.dtype),
        in_specs=[
            pl.BlockSpec(memory_space=pltpu.MemorySpace.VMEM),   # x
            pl.BlockSpec(memory_space=pltpu.MemorySpace.VMEM),   # weight (Fin, Fout)
            pl.BlockSpec(memory_space=pltpu.MemorySpace.VMEM),   # bias (1, Fout)
        ],
        out_specs=pl.BlockSpec(memory_space=pltpu.MemorySpace.VMEM),
        cost_estimate=pl.CostEstimate(
            flops=2 * m * fin * fout,
            transcendentals=0,
            bytes_accessed=bytes_accessed,
        ),
    )(x2d, w_t, b2d)

    return out2d.reshape(*orig_shape[:-1], fout)


@jax.jit
def model_forward(x1, weight, bias):
    v1 = pallas_linear(x1, weight, bias)
    v2 = jnp.transpose(v1, (0, 2, 1))  # dead value, as in the reference; DCE'd under jit
    del v2
    # Reference returns v1.permute(0, 1) which is invalid for a 3-D tensor;
    # we return v1 (identity on the data) instead.
    return v1


if __name__ == "__main__":
    key = jax.random.PRNGKey(0)
    kx, kw, kb = jax.random.split(key, 3)

    # Deterministic parameter init mimicking nn.Linear(2, 2):
    # uniform(-1/sqrt(fan_in), 1/sqrt(fan_in))
    fan_in = 2
    bound = 1.0 / (fan_in ** 0.5)
    weight = jax.random.uniform(kw, (2, 2), jnp.float32, -bound, bound)
    bias = jax.random.uniform(kb, (2,), jnp.float32, -bound, bound)

    # Input consistent with x1 = torch.randn(5, 2, 2)
    x1 = jax.random.normal(kx, (5, 2, 2), jnp.float32)

    out = model_forward(x1, weight, bias)
    jax.block_until_ready(out)

    # Sanity check against plain JAX reference: y = x @ W.T + b
    ref = jnp.einsum("bsf,of->bso", x1, weight) + bias
    assert out.shape == (5, 2, 2)
    assert jnp.allclose(out, ref, atol=1e-5, rtol=1e-5)

    print("KERNEL_OK")
</pallas_src>

<mosaic_0001>
module attributes {stable_mosaic.version = 11 : i64} {
  func.func @linear_kernel(%arg0: memref<10x2xf32, #tpu.memory_space<vmem>>, %arg1: memref<2x2xf32, #tpu.memory_space<vmem>>, %arg2: memref<1x2xf32, #tpu.memory_space<vmem>>, %arg3: memref<10x2xf32, #tpu.memory_space<vmem>>) attributes {dimension_semantics = [], scalar_prefetch = 0 : i64, scratch_operands = 0 : i64, tpu.core_type = #tpu.core_type<tc>} {
    %c0 = arith.constant 0 : index
    %c0_0 = arith.constant 0 : index
    %0 = vector.load %arg0[%c0, %c0_0] : memref<10x2xf32, #tpu.memory_space<vmem>>, vector<10x2xf32>
    %c0_1 = arith.constant 0 : index
    %c0_2 = arith.constant 0 : index
    %1 = vector.load %arg1[%c0_1, %c0_2] : memref<2x2xf32, #tpu.memory_space<vmem>>, vector<2x2xf32>
    %cst = arith.constant dense<0.000000e+00> : vector<10x2xf32>
    %2 = tpu.matmul %0, %1, %cst {dimension_numbers = #tpu.dot_dimension_numbers<[1], [0], [0], [1], [0, 0, 1, 1], [], []>} : vector<10x2xf32>, vector<2x2xf32>, vector<10x2xf32> -> vector<10x2xf32>
    %c0_3 = arith.constant 0 : index
    %c0_4 = arith.constant 0 : index
    %3 = vector.load %arg2[%c0_3, %c0_4] : memref<1x2xf32, #tpu.memory_space<vmem>>, vector<1x2xf32>
    %4 = vector.broadcast %3 : vector<1x2xf32> to vector<10x2xf32>
    %5 = arith.addf %2, %4 : vector<10x2xf32>
    %c0_5 = arith.constant 0 : index
    %c0_6 = arith.constant 0 : index
    %6 = vector.load %arg3[%c0_5, %c0_6] : memref<10x2xf32, #tpu.memory_space<vmem>>, vector<10x2xf32>
    tpu.vector_store %arg3[%c0_5, %c0_6], %5 {strides = array<i32>} : memref<10x2xf32, #tpu.memory_space<vmem>>, vector<10x2xf32>,
    return
  }
}

</mosaic_0001>

<llo_original>
// kernel: model_forward.1
$region0: #{model_forward.1}
  #allocation0 [shape = 'u32[]', space=smem, size = 0x4, offset = 0x4, fixed_abs, tag = 'smem constant byte address 0x4 - core index']
  #allocation1 [shape = 'u32[144,128]{1,0:T(1,128)}', space=vmem, size = 0x12000, scoped, tag = 'internal scratch']
  %s0 = inlined_call_operand.vmem [shape: f32[10,2], index: 0, kind: input, shape index: {}]
  %s1 = inlined_call_operand.vmem [shape: f32[2,2], index: 1, kind: input, shape index: {}]
  %s2 = inlined_call_operand.vmem [shape: f32[1,2], index: 2, kind: input, shape index: {}]
  %s3 = inlined_call_operand.vmem [shape: f32[10,2], index: 3, kind: output, shape index: {}]
  %s4 = sld [smem:[#allocation0]]
  $region22: #{model_forward.1} parent=0
    _
  %s6 = ssub.s32 1, %s4
  %s7 = scalar_select 0, %s6, %s4
  // Predicated region
  $region2: #{model_forward.1} parent=0 // pred_check
    _
  $region3: #{model_forward.1} parent=0 // pred_check_branch
    %9 = sbr.rel (0) target = $region5
  $region4: #{model_forward.1} parent=0 // pred_region
    _
  $region5: #{model_forward.1} parent=0 // pred_fallthru
    _
  // Predicated region
  $region6: #{model_forward.1} parent=0 // pred_check
    _
  $region7: #{model_forward.1} parent=0 // pred_check_branch
    %11 = sbr.rel (0) target = $region9
  $region8: #{model_forward.1} parent=0 // pred_region
    _
  $region9: #{model_forward.1} parent=0 // pred_fallthru
    _
  // Predicated region
  $region10: #{model_forward.1} parent=0 // pred_check
    _
  $region11: #{model_forward.1} parent=0 // pred_check_branch
    %13 = sbr.rel (0) target = $region13
  $region12: #{model_forward.1} parent=0 // pred_region
    _
  $region13: #{model_forward.1} parent=0 // pred_fallthru
    _
  %v14 = vld [vmem:[%s0] sm:$0xff]
  %v15 = vld [vmem:[%s0 + $0x8] sm:$0x3]
  %v16 = vld [vmem:[%s1] sm:$0x3]
  %v17 = vld [vmem:[%s2] sm:$0x1]
  %v19 = vlaneseq
  %v20 = vshrl.u32 %v19, 7
  %v21 = vsub.s32 0, %v20
  %v22 = vrot.slane %v17, %v21
  %vm24 = vcmask 15360
  %v26 = vsel %vm24, %v14, 0
  %v29 = vsel %vm24, %v15, 0
  %vm31 = vcmask 1041408
  %v33 = vsel %vm31, %v16, 0
  %35 = vmatprep.subr.mxu0 0.0
  %36 = vmatpush1.msra.mxu0 0.0
  %37 = vmatprep.subr.mxu0 0.0
  %38 = vmatpush1.msra.mxu0 0.0
  %39 = vmatprep.subr.mxu0 0.0
  %40 = vmatpush1.msra.mxu0 0.0
  %41 = vmatprep.subr.mxu0 0.0
  %42 = vmatpush1.msra.mxu0 0.0
  %43 = vmatprep.subr.mxu0 0.0
  %44 = vmatpush1.msra.mxu0 0.0
  %45 = vmatprep.subr.mxu0 0.0
  %46 = vmatpush1.msra.mxu0 0.0
  %47 = vmatprep.subr.mxu0 0.0
  %48 = vmatpush1.msra.mxu0 0.0
  %49 = vmatprep.subr.mxu0 0.0
  %50 = vmatpush1.msra.mxu0 0.0
  %51 = vmatprep.subr.mxu0 0.0
  %52 = vmatpush1.msra.mxu0 0.0
  %53 = vmatprep.subr.mxu0 0.0
  %54 = vmatpush1.msra.mxu0 0.0
  %55 = vmatprep.subr.mxu0 0.0
  %56 = vmatpush1.msra.mxu0 0.0
  %57 = vmatprep.subr.mxu0 0.0
  %58 = vmatpush1.msra.mxu0 0.0
  %59 = vmatprep.subr.mxu0 0.0
  %60 = vmatpush1.msra.mxu0 0.0
  %61 = vmatprep.subr.mxu0 0.0
  %62 = vmatpush1.msra.mxu0 0.0
  %63 = vmatprep.subr.mxu0 0.0
  %64 = vmatpush1.msra.mxu0 0.0
  %65 = vmatprep.subr.mxu0 0.0
  %66 = vmatpush1.msra.mxu0 %v33
  %67 = vmatprep.subr.mxu0 0.0
  %68 = vmatpush2.msra.mxu0 0.0
  %69 = vmatprep.subr.mxu0 0.0
  %70 = vmatpush2.msra.mxu0 0.0
  %71 = vmatprep.subr.mxu0 0.0
  %72 = vmatpush2.msra.mxu0 0.0
  %73 = vmatprep.subr.mxu0 0.0
  %74 = vmatpush2.msra.mxu0 0.0
  %75 = vmatprep.subr.mxu0 0.0
  %76 = vmatpush2.msra.mxu0 0.0
  %77 = vmatprep.subr.mxu0 0.0
  %78 = vmatpush2.msra.mxu0 0.0
  %79 = vmatprep.subr.mxu0 0.0
  %80 = vmatpush2.msra.mxu0 0.0
  %81 = vmatprep.subr.mxu0 0.0
  %82 = vmatpush2.msra.mxu0 0.0
  %83 = vmatprep.subr.mxu0 0.0
  %84 = vmatpush2.msra.mxu0 0.0
  %85 = vmatprep.subr.mxu0 0.0
  %86 = vmatpush2.msra.mxu0 0.0
  %87 = vmatprep.subr.mxu0 0.0
  %88 = vmatpush2.msra.mxu0 0.0
  %89 = vmatprep.subr.mxu0 0.0
  %90 = vmatpush2.msra.mxu0 0.0
  %91 = vmatprep.subr.mxu0 0.0
  %92 = vmatpush2.msra.mxu0 0.0
  %93 = vmatprep.subr.mxu0 0.0
  %94 = vmatpush2.msra.mxu0 0.0
  %95 = vmatprep.subr.mxu0 0.0
  %96 = vmatpush2.msra.mxu0 0.0
  %97 = vmatprep.subr.mxu0 0.0
  %98 = vmatpush2.msra.mxu0 0.0
  %99 = vmatprep.mubr.f32.mxu0 0.0
  %100 = vmatmul.mubr.f32.gmra.mxu0 %v26
  %v101 = vpop.f32.mrf.mxu0
  %v102 = vadd.f32 %v22, %v101
  %v103 = vpop.f32.mrf.mxu0
  %104 = vmatprep.mubr.f32.mxu0 0.0
  %105 = vmatmul.mubr.f32.gmra.mxu0 %v29
  %v106 = vpop.f32.mrf.mxu0
  %v107 = vadd.f32 %v22, %v106
  %v108 = vpop.f32.mrf.mxu0
  %109 = vdwg.mxu0
  %110 = vst.msk [vmem:[%s3] sm:$0xff] %vm24, %v102
  %vm111 = vcmask 9216
  %112 = vst.msk [vmem:[%s3 + $0x8] sm:$0x3] %vm111, %v107
  // Predicated region
  $region14: #{model_forward.1} parent=0 // pred_check
    _
  $region15: #{model_forward.1} parent=0 // pred_check_branch
    %114 = sbr.rel (0) target = $region17
  $region16: #{model_forward.1} parent=0 // pred_region
    _
  $region17: #{model_forward.1} parent=0 // pred_fallthru
    _
  // Predicated region
  $region18: #{model_forward.1} parent=0 // pred_check
    _
  $region19: #{model_forward.1} parent=0 // pred_check_branch
    %116 = sbr.rel (0) target = $region21
  $region20: #{model_forward.1} parent=0 // pred_region
    _
  $region21: #{model_forward.1} parent=0 // pred_fallthru
    _

</llo_original>
